<compile_context>
chip_gen: v7x
topology: tpu7x:2x2x1
jax: 0.10.0
libtpu: 0.0.40
codegen_flags: <defaults>
</compile_context>

<pallas_src>
import functools

import jax
import jax.numpy as jnp
from jax.experimental import pallas as pl
from jax.experimental.pallas import tpu as pltpu

LN_EPS = 1e-5  # torch.nn.LayerNorm default
_LANE = 128
_SUBLANE = 8
_MIB = 1024 * 1024
# v7x has 64 MiB VMEM per TensorCore (v5e/v6e: 128 MiB); budget the resident
# set against ~44 MiB and leave headroom for Mosaic's internal scratch.
_VMEM_BUDGET = 44 * _MIB


def _round_up(v, m):
    return (v + m - 1) // m * m


def _cdiv(a, b):
    return -(-a // b)


def _pick_chunk(tile_b, target):
    """Largest row-chunk (multiple of 8, <= target) that evenly divides tile_b."""
    target = max(target, _SUBLANE)
    units = tile_b // _SUBLANE
    best = _SUBLANE
    for d in range(1, units + 1):
        if units % d == 0 and d * _SUBLANE <= target:
            best = d * _SUBLANE
    if tile_b // best > 16:  # avoid pathological unroll bloat
        best = tile_b
    return best


def _block(h, w, p, n_true):
    """Linear -> LayerNorm (two-pass, lane-mask aware) -> ReLU on padded tiles.

    h:      (rows, K_pad) activations
    w:      (K_pad, N_pad) weight (padded rows/cols are zero)
    p:      (4, N_pad) f32 packed [bias; gamma; beta; lane_mask]
    n_true: true (unpadded) hidden width for the LN statistics.
    """
    h = jnp.dot(h.astype(w.dtype), w, preferred_element_type=jnp.float32)
    h = h + p[0:1, :]                                   # bias (0 on padded lanes)
    inv_n = 1.0 / n_true
    mu = jnp.sum(h, axis=-1, keepdims=True) * inv_n     # padded lanes contribute 0
    d = (h - mu) * p[3:4, :]                            # mask kills padded lanes
    var = jnp.sum(d * d, axis=-1, keepdims=True) * inv_n
    h = d * jax.lax.rsqrt(var + LN_EPS)
    h = h * p[1:2, :] + p[2:3, :]                       # gamma / beta (0 on padding)
    return jnp.maximum(h, 0.0)                          # ReLU; Dropout = identity (eval)


def base_expert_kernel(x_ref, w1_ref, p1_ref, w2_ref, p2_ref, wo_ref, bo_ref,
                       out_ref, *, h1_true, h2_true, chunk_b):
    # Hoist grid-invariant, single-buffered parameter loads out of the chunk loop.
    w1 = w1_ref[...]
    p1 = p1_ref[...].astype(jnp.float32)
    w2 = w2_ref[...]
    p2 = p2_ref[...].astype(jnp.float32)
    wo = wo_ref[...]
    bo = bo_ref[...].astype(jnp.float32)

    tile_b = x_ref.shape[0]
    n_chunks = tile_b // chunk_b
    # Statically unrolled, independent row chunks: lets the LLO scheduler
    # overlap chunk c's LayerNorm/ReLU (VPU/XLU slots) with chunk c+1's
    # matmuls (MXU slot).
    for c in range(n_chunks):
        r0 = c * chunk_b
        h = _block(x_ref[r0:r0 + chunk_b, :], w1, p1, h1_true)
        h = _block(h, w2, p2, h2_true)
        out = jnp.dot(h.astype(wo.dtype), wo,
                      preferred_element_type=jnp.float32) + bo
        out_ref[r0:r0 + chunk_b, :] = out.astype(out_ref.dtype)


def base_expert_forward(x, params, *, matmul_dtype=None, out_dtype=None,
                        max_tile_b=512, chunk_rows=256):
    """Fused MLP (Linear->LN->ReLU x2) + output projection.

    params = (w1, b1, g1, be1, w2, b2, g2, be2, wo, bo), weights stored (in, out).
    matmul_dtype: MXU operand dtype.  bf16 is the fast path on v5e/v6e/v7x
        alike (v5e's MXU is bf16 native); None keeps x.dtype.  Accumulation and
        LayerNorm math are always f32.
    out_dtype: output dtype (e.g. bf16 to halve writeback); None keeps x.dtype.
    """
    (w1, b1, g1, be1, w2, b2, g2, be2, wo, bo) = params
    B, D_in = x.shape
    H1, H2, D_out = w1.shape[1], w2.shape[1], wo.shape[1]

    # Lane-dense padding of every feature axis (full-vreg loads, unmasked vst).
    # 128 is ideal for v5e's 128x128 MXU; on v6e/v7x a 128-wide K/N only
    # half-fills the 256-wide MXU -- don't pad further (wasted FLOPs), but
    # prefer real hidden widths that are multiples of 256 on those chips.
    Dp = _round_up(D_in, _LANE)
    H1p = _round_up(H1, _LANE)
    H2p = _round_up(H2, _LANE)
    Dop = _round_up(D_out, _LANE)

    cdt = jnp.dtype(matmul_dtype) if matmul_dtype is not None else jnp.dtype(x.dtype)
    odt = jnp.dtype(out_dtype) if out_dtype is not None else jnp.dtype(x.dtype)
    in_isz = cdt.itemsize
    out_isz = odt.itemsize

    weight_bytes = (Dp * H1p + H1p * H2p + H2p * Dop) * in_isz   # Buffered(1): 1 copy
    param_bytes = (4 * H1p + 4 * H2p + Dop) * 4

    def resident_bytes(tb, cb):
        io = 2 * tb * Dp * in_isz + 2 * tb * Dop * out_isz       # double-buffered x/out
        tmp = 2 * cb * (H1p + H2p + Dop) * 4                     # f32 chunk temporaries
        return weight_bytes + param_bytes + io + tmp

    # Batch tiling: even split (never pads more than one tile), at least 2 grid
    # steps when the batch allows it (so v7x's two TensorCores both get work on
    # the "parallel" axis; costs only ~0.35us/step on v5e/v6e), shrink the tile
    # until the resident set fits the VMEM budget.
    Bp = _round_up(B, _SUBLANE)
    min_steps = 2 if Bp >= 2 * _SUBLANE else 1
    n_steps = max(_cdiv(Bp, max_tile_b), min_steps)
    tile_b = _round_up(_cdiv(Bp, n_steps), _SUBLANE)
    while tile_b > _SUBLANE and \
            resident_bytes(tile_b, min(tile_b, chunk_rows)) > _VMEM_BUDGET:
        n_steps += 1
        tile_b = _round_up(_cdiv(Bp, n_steps), _SUBLANE)
    # TODO(synk): if the weight set alone exceeds the VMEM budget (very large
    # hidden dims on v7x's 64 MiB), add a K/N reduction grid axis ("arbitrary")
    # with an f32 accumulator instead of keeping whole weight matrices resident.
    Bp = n_steps * tile_b
    chunk_b = _pick_chunk(tile_b, chunk_rows)

    def pad2(a, r, c):
        return jnp.pad(a, ((0, r - a.shape[0]), (0, c - a.shape[1])))

    xp = pad2(x, Bp, Dp).astype(cdt)
    w1p = pad2(w1, Dp, H1p).astype(cdt)
    w2p = pad2(w2, H1p, H2p).astype(cdt)
    wop = pad2(wo, H2p, Dop).astype(cdt)

    # Pack (bias, gamma, beta, lane-mask) per layer into one (4, Hpad) f32 ref.
    def pack(b, g, be, n_true, n_pad):
        stk = jnp.concatenate(
            [b.reshape(1, -1), g.reshape(1, -1), be.reshape(1, -1),
             jnp.ones((1, n_true), jnp.float32)], axis=0).astype(jnp.float32)
        return jnp.pad(stk, ((0, 0), (0, n_pad - n_true)))

    p1 = pack(b1, g1, be1, H1, H1p)
    p2 = pack(b2, g2, be2, H2, H2p)
    bop = jnp.pad(bo.reshape(1, -1).astype(jnp.float32),
                  ((0, 0), (0, Dop - D_out)))

    # Grid-invariant refs -> single buffer (index_map returns the same block
    # every step; default double-buffering would just waste VMEM).
    def invariant(shape):
        return pl.BlockSpec(shape, lambda i: (0,) * len(shape),
                            pipeline_mode=pl.Buffered(1))

    flops = 2 * Bp * (Dp * H1p + H1p * H2p + H2p * Dop)
    transcendentals = 2 * Bp                       # one rsqrt per row per LN layer
    bytes_accessed = int(xp.size * xp.dtype.itemsize
                         + w1p.size * w1p.dtype.itemsize
                         + w2p.size * w2p.dtype.itemsize
                         + wop.size * wop.dtype.itemsize
                         + (p1.size + p2.size + bop.size) * 4
                         + Bp * Dop * out_isz)

    vmem_limit = int(min(60 * _MIB,
                         max(32 * _MIB,
                             resident_bytes(tile_b, chunk_b) * 3 // 2 + 2 * _MIB)))

    kernel = functools.partial(base_expert_kernel, h1_true=float(H1),
                               h2_true=float(H2), chunk_b=chunk_b)

    out = pl.pallas_call(
        kernel,
        out_shape=jax.ShapeDtypeStruct((Bp, Dop), odt),
        grid=(n_steps,),
        in_specs=[
            pl.BlockSpec((tile_b, Dp), lambda i: (i, 0)),   # x tile (double-buffered)
            invariant((Dp, H1p)), invariant((4, H1p)),      # layer 1: w, [b;g;be;mask]
            invariant((H1p, H2p)), invariant((4, H2p)),     # layer 2: w, [b;g;be;mask]
            invariant((H2p, Dop)), invariant((1, Dop)),     # output projection: w, b
        ],
        out_specs=pl.BlockSpec((tile_b, Dop), lambda i: (i, 0)),
        compiler_params=pltpu.CompilerParams(
            dimension_semantics=("parallel",),
            vmem_limit_bytes=vmem_limit),
        cost_estimate=pl.CostEstimate(flops=flops,
                                      transcendentals=transcendentals,
                                      bytes_accessed=bytes_accessed),
    )(xp, w1p, p1, w2p, p2, wop, bop)

    return out[:B, :D_out]


def reference_forward(x, params):
    (w1, b1, g1, be1, w2, b2, g2, be2, wo, bo) = params
    hp = jax.lax.Precision.HIGHEST

    def block(h, w, b, g, be):
        h = jnp.dot(h, w, precision=hp) + b
        mu = h.mean(-1, keepdims=True)
        var = ((h - mu) ** 2).mean(-1, keepdims=True)
        h = (h - mu) / jnp.sqrt(var + LN_EPS) * g + be
        return jnp.maximum(h, 0.0)

    h = block(x, w1, b1, g1, be1)
    h = block(h, w2, b2, g2, be2)
    return jnp.dot(h, wo, precision=hp) + bo


def _make_params(key, d_in, h1, h2, d_out):
    ks = jax.random.split(key, 6)
    w1 = jax.random.normal(ks[0], (d_in, h1), jnp.float32) * 0.1
    b1 = jax.random.normal(ks[1], (1, h1), jnp.float32) * 0.01
    g1 = jnp.ones((1, h1), jnp.float32) * 1.1
    be1 = jnp.full((1, h1), 0.05, jnp.float32)
    w2 = jax.random.normal(ks[2], (h1, h2), jnp.float32) * 0.1
    b2 = jax.random.normal(ks[3], (1, h2), jnp.float32) * 0.01
    g2 = jnp.ones((1, h2), jnp.float32) * 0.9
    be2 = jnp.full((1, h2), -0.03, jnp.float32)
    wo = jax.random.normal(ks[4], (h2, d_out), jnp.float32) * 0.1
    bo = jax.random.normal(ks[5], (1, d_out), jnp.float32) * 0.01
    return (w1, b1, g1, be1, w2, b2, g2, be2, wo, bo)


if __name__ == "__main__":
    key = jax.random.PRNGKey(0)
    k1, k2, k3, k4 = jax.random.split(key, 4)

    # 1) Shapes consistent with the module: batch=8, input_dim=32,
    #    hidden_dims=[64, 32], output_dim=16, activation='relu'.
    B, D_in, H1, H2, D_out = 8, 32, 64, 32, 16
    x = jax.random.normal(k1, (B, D_in), jnp.float32)
    params = _make_params(k2, D_in, H1, H2, D_out)
    ref = reference_forward(x, params)

    out = jax.block_until_ready(base_expert_forward(x, params))
    assert out.shape == (B, D_out)
    assert jnp.allclose(out, ref, atol=1e-4, rtol=1e-4), \
        float(jnp.max(jnp.abs(out - ref)))

    # bf16 MXU-operand fast path (all generations); f32 accumulation / LN math.
    out_bf16 = jax.block_until_ready(
        base_expert_forward(x, params, matmul_dtype=jnp.bfloat16))
    assert jnp.allclose(out_bf16, ref, atol=5e-2, rtol=5e-2)

    # 2) Non-multiple-of-128 dims and a larger batch: exercises the 2-step
    #    "parallel" grid (TensorCore-shardable on v7x), the LN lane masking and
    #    the in-kernel row chunking (chunk_rows lowered so it triggers here).
    B2, D2, H1b, H2b, Do2 = 100, 96, 160, 192, 48
    x2 = jax.random.normal(k3, (B2, D2), jnp.float32)
    params2 = _make_params(k4, D2, H1b, H2b, Do2)
    ref2 = reference_forward(x2, params2)
    out2 = jax.block_until_ready(
        base_expert_forward(x2, params2, chunk_rows=16))
    assert out2.shape == (B2, Do2)
    assert jnp.allclose(out2, ref2, atol=2e-3, rtol=2e-3), \
        float(jnp.max(jnp.abs(out2 - ref2)))

    # TODO(synk): the 3-D (seq_len) MultiheadAttention branch of
    # BaseExpert.forward is never taken for 2-D inputs and is not implemented.
    print("KERNEL_OK")
</pallas_src>

<mosaic_0001>
module attributes {stable_mosaic.version = 11 : i64} {
  func.func @base_expert_kernel(%arg0: i32, %arg1: memref<8x128xf32, #tpu.memory_space<vmem>>, %arg2: memref<128x128xf32, #tpu.memory_space<vmem>>, %arg3: memref<4x128xf32, #tpu.memory_space<vmem>>, %arg4: memref<128x128xf32, #tpu.memory_space<vmem>>, %arg5: memref<4x128xf32, #tpu.memory_space<vmem>>, %arg6: memref<128x128xf32, #tpu.memory_space<vmem>>, %arg7: memref<1x128xf32, #tpu.memory_space<vmem>>, %arg8: memref<8x128xf32, #tpu.memory_space<vmem>>) attributes {dimension_semantics = [#tpu.dimension_semantics<parallel>], iteration_bounds = array<i64: 1>, scalar_prefetch = 0 : i64, scratch_operands = 0 : i64, tpu.core_type = #tpu.core_type<tc>, window_params = [{transform_indices = @transform_0, window_bounds = array<i64: 8, 128>}, {pipeline_mode = #tpu.pipeline_mode<synchronous>, transform_indices = @transform_1, window_bounds = array<i64: 128, 128>}, {pipeline_mode = #tpu.pipeline_mode<synchronous>, transform_indices = @transform_2, window_bounds = array<i64: 4, 128>}, {pipeline_mode = #tpu.pipeline_mode<synchronous>, transform_indices = @transform_3, window_bounds = array<i64: 128, 128>}, {pipeline_mode = #tpu.pipeline_mode<synchronous>, transform_indices = @transform_4, window_bounds = array<i64: 4, 128>}, {pipeline_mode = #tpu.pipeline_mode<synchronous>, transform_indices = @transform_5, window_bounds = array<i64: 128, 128>}, {pipeline_mode = #tpu.pipeline_mode<synchronous>, transform_indices = @transform_6, window_bounds = array<i64: 1, 128>}, {transform_indices = @transform_7, window_bounds = array<i64: 8, 128>}]} {
    %c0 = arith.constant 0 : index
    %c0_0 = arith.constant 0 : index
    %0 = vector.load %arg2[%c0, %c0_0] : memref<128x128xf32, #tpu.memory_space<vmem>>, vector<128x128xf32>
    %c0_1 = arith.constant 0 : index
    %c0_2 = arith.constant 0 : index
    %1 = vector.load %arg3[%c0_1, %c0_2] : memref<4x128xf32, #tpu.memory_space<vmem>>, vector<4x128xf32>
    %c0_3 = arith.constant 0 : index
    %c0_4 = arith.constant 0 : index
    %2 = vector.load %arg4[%c0_3, %c0_4] : memref<128x128xf32, #tpu.memory_space<vmem>>, vector<128x128xf32>
    %c0_5 = arith.constant 0 : index
    %c0_6 = arith.constant 0 : index
    %3 = vector.load %arg5[%c0_5, %c0_6] : memref<4x128xf32, #tpu.memory_space<vmem>>, vector<4x128xf32>
    %c0_7 = arith.constant 0 : index
    %c0_8 = arith.constant 0 : index
    %4 = vector.load %arg6[%c0_7, %c0_8] : memref<128x128xf32, #tpu.memory_space<vmem>>, vector<128x128xf32>
    %c0_9 = arith.constant 0 : index
    %c0_10 = arith.constant 0 : index
    %5 = vector.load %arg7[%c0_9, %c0_10] : memref<1x128xf32, #tpu.memory_space<vmem>>, vector<1x128xf32>
    %c0_11 = arith.constant 0 : index
    %c0_12 = arith.constant 0 : index
    %6 = vector.load %arg1[%c0_11, %c0_12] : memref<8x128xf32, #tpu.memory_space<vmem>>, vector<8x128xf32>
    %cst = arith.constant dense<0.000000e+00> : vector<8x128xf32>
    %7 = tpu.matmul %6, %0, %cst {dimension_numbers = #tpu.dot_dimension_numbers<[1], [0], [0], [1], [0, 0, 1, 1], [], []>} : vector<8x128xf32>, vector<128x128xf32>, vector<8x128xf32> -> vector<8x128xf32>
    %8 = vector.extract_strided_slice %1 {offsets = [0, 0], sizes = [1, 128], strides = [1, 1]} : vector<4x128xf32> to vector<1x128xf32>
    %9 = vector.broadcast %8 : vector<1x128xf32> to vector<8x128xf32>
    %10 = arith.addf %7, %9 : vector<8x128xf32>
    %cst_13 = arith.constant dense<0.000000e+00> : vector<8xf32>
    %11 = vector.multi_reduction <add>, %10, %cst_13 [1] : vector<8x128xf32> to vector<8xf32>
    %12 = vector.shape_cast %11 : vector<8xf32> to vector<8x1xf32>
    %cst_14 = arith.constant 1.562500e-02 : f32
    %13 = vector.broadcast %cst_14 : f32 to vector<8x1xf32>
    %14 = arith.mulf %12, %13 : vector<8x1xf32>
    %15 = vector.broadcast %14 : vector<8x1xf32> to vector<8x128xf32>
    %16 = arith.subf %10, %15 : vector<8x128xf32>
    %17 = vector.extract_strided_slice %1 {offsets = [3, 0], sizes = [1, 128], strides = [1, 1]} : vector<4x128xf32> to vector<1x128xf32>
    %18 = vector.broadcast %17 : vector<1x128xf32> to vector<8x128xf32>
    %19 = arith.mulf %16, %18 : vector<8x128xf32>
    %20 = arith.mulf %19, %19 : vector<8x128xf32>
    %cst_15 = arith.constant dense<0.000000e+00> : vector<8xf32>
    %21 = vector.multi_reduction <add>, %20, %cst_15 [1] : vector<8x128xf32> to vector<8xf32>
    %22 = vector.shape_cast %21 : vector<8xf32> to vector<8x1xf32>
    %cst_16 = arith.constant 1.562500e-02 : f32
    %23 = vector.broadcast %cst_16 : f32 to vector<8x1xf32>
    %24 = arith.mulf %22, %23 : vector<8x1xf32>
    %cst_17 = arith.constant 9.99999974E-6 : f32
    %25 = vector.broadcast %cst_17 : f32 to vector<8x1xf32>
    %26 = arith.addf %24, %25 : vector<8x1xf32>
    %27 = math.rsqrt %26 : vector<8x1xf32>
    %28 = vector.broadcast %27 : vector<8x1xf32> to vector<8x128xf32>
    %29 = arith.mulf %19, %28 : vector<8x128xf32>
    %30 = vector.extract_strided_slice %1 {offsets = [1, 0], sizes = [1, 128], strides = [1, 1]} : vector<4x128xf32> to vector<1x128xf32>
    %31 = vector.broadcast %30 : vector<1x128xf32> to vector<8x128xf32>
    %32 = arith.mulf %29, %31 : vector<8x128xf32>
    %33 = vector.extract_strided_slice %1 {offsets = [2, 0], sizes = [1, 128], strides = [1, 1]} : vector<4x128xf32> to vector<1x128xf32>
    %34 = vector.broadcast %33 : vector<1x128xf32> to vector<8x128xf32>
    %35 = arith.addf %32, %34 : vector<8x128xf32>
    %cst_18 = arith.constant 0.000000e+00 : f32
    %36 = vector.broadcast %cst_18 : f32 to vector<8x128xf32>
    %37 = arith.maximumf %35, %36 : vector<8x128xf32>
    %cst_19 = arith.constant dense<0.000000e+00> : vector<8x128xf32>
    %38 = tpu.matmul %37, %2, %cst_19 {dimension_numbers = #tpu.dot_dimension_numbers<[1], [0], [0], [1], [0, 0, 1, 1], [], []>} : vector<8x128xf32>, vector<128x128xf32>, vector<8x128xf32> -> vector<8x128xf32>
    %39 = vector.extract_strided_slice %3 {offsets = [0, 0], sizes = [1, 128], strides = [1, 1]} : vector<4x128xf32> to vector<1x128xf32>
    %40 = vector.broadcast %39 : vector<1x128xf32> to vector<8x128xf32>
    %41 = arith.addf %38, %40 : vector<8x128xf32>
    %cst_20 = arith.constant dense<0.000000e+00> : vector<8xf32>
    %42 = vector.multi_reduction <add>, %41, %cst_20 [1] : vector<8x128xf32> to vector<8xf32>
    %43 = vector.shape_cast %42 : vector<8xf32> to vector<8x1xf32>
    %cst_21 = arith.constant 3.125000e-02 : f32
    %44 = vector.broadcast %cst_21 : f32 to vector<8x1xf32>
    %45 = arith.mulf %43, %44 : vector<8x1xf32>
    %46 = vector.broadcast %45 : vector<8x1xf32> to vector<8x128xf32>
    %47 = arith.subf %41, %46 : vector<8x128xf32>
    %48 = vector.extract_strided_slice %3 {offsets = [3, 0], sizes = [1, 128], strides = [1, 1]} : vector<4x128xf32> to vector<1x128xf32>
    %49 = vector.broadcast %48 : vector<1x128xf32> to vector<8x128xf32>
    %50 = arith.mulf %47, %49 : vector<8x128xf32>
    %51 = arith.mulf %50, %50 : vector<8x128xf32>
    %cst_22 = arith.constant dense<0.000000e+00> : vector<8xf32>
    %52 = vector.multi_reduction <add>, %51, %cst_22 [1] : vector<8x128xf32> to vector<8xf32>
    %53 = vector.shape_cast %52 : vector<8xf32> to vector<8x1xf32>
    %cst_23 = arith.constant 3.125000e-02 : f32
    %54 = vector.broadcast %cst_23 : f32 to vector<8x1xf32>
    %55 = arith.mulf %53, %54 : vector<8x1xf32>
    %cst_24 = arith.constant 9.99999974E-6 : f32
    %56 = vector.broadcast %cst_24 : f32 to vector<8x1xf32>
    %57 = arith.addf %55, %56 : vector<8x1xf32>
    %58 = math.rsqrt %57 : vector<8x1xf32>
    %59 = vector.broadcast %58 : vector<8x1xf32> to vector<8x128xf32>
    %60 = arith.mulf %50, %59 : vector<8x128xf32>
    %61 = vector.extract_strided_slice %3 {offsets = [1, 0], sizes = [1, 128], strides = [1, 1]} : vector<4x128xf32> to vector<1x128xf32>
    %62 = vector.broadcast %61 : vector<1x128xf32> to vector<8x128xf32>
    %63 = arith.mulf %60, %62 : vector<8x128xf32>
    %64 = vector.extract_strided_slice %3 {offsets = [2, 0], sizes = [1, 128], strides = [1, 1]} : vector<4x128xf32> to vector<1x128xf32>
    %65 = vector.broadcast %64 : vector<1x128xf32> to vector<8x128xf32>
    %66 = arith.addf %63, %65 : vector<8x128xf32>
    %cst_25 = arith.constant 0.000000e+00 : f32
    %67 = vector.broadcast %cst_25 : f32 to vector<8x128xf32>
    %68 = arith.maximumf %66, %67 : vector<8x128xf32>
    %cst_26 = arith.constant dense<0.000000e+00> : vector<8x128xf32>
    %69 = tpu.matmul %68, %4, %cst_26 {dimension_numbers = #tpu.dot_dimension_numbers<[1], [0], [0], [1], [0, 0, 1, 1], [], []>} : vector<8x128xf32>, vector<128x128xf32>, vector<8x128xf32> -> vector<8x128xf32>
    %70 = vector.broadcast %5 : vector<1x128xf32> to vector<8x128xf32>
    %71 = arith.addf %69, %70 : vector<8x128xf32>
    %c0_27 = arith.constant 0 : index
    %c0_28 = arith.constant 0 : index
    %72 = vector.load %arg8[%c0_27, %c0_28] : memref<8x128xf32, #tpu.memory_space<vmem>>, vector<8x128xf32>
    tpu.vector_store %arg8[%c0_27, %c0_28], %71 {strides = array<i32>} : memref<8x128xf32, #tpu.memory_space<vmem>>, vector<8x128xf32>,
    return
  }
  func.func @transform_0(%arg0: i32) -> (i32, i32) {
    %c0_i32 = arith.constant 0 : i32
    %c0_i32_0 = arith.constant 0 : i32
    return %arg0, %c0_i32 : i32, i32
  }
  func.func @transform_1(%arg0: i32) -> (i32, i32) {
    %c0_i32 = arith.constant 0 : i32
    %c0_i32_0 = arith.constant 0 : i32
    %c0_i32_1 = arith.constant 0 : i32
    return %c0_i32, %c0_i32_0 : i32, i32
  }
  func.func @transform_2(%arg0: i32) -> (i32, i32) {
    %c0_i32 = arith.constant 0 : i32
    %c0_i32_0 = arith.constant 0 : i32
    %c0_i32_1 = arith.constant 0 : i32
    return %c0_i32, %c0_i32_0 : i32, i32
  }
  func.func @transform_3(%arg0: i32) -> (i32, i32) {
    %c0_i32 = arith.constant 0 : i32
    %c0_i32_0 = arith.constant 0 : i32
    %c0_i32_1 = arith.constant 0 : i32
    return %c0_i32, %c0_i32_0 : i32, i32
  }
  func.func @transform_4(%arg0: i32) -> (i32, i32) {
    %c0_i32 = arith.constant 0 : i32
    %c0_i32_0 = arith.constant 0 : i32
    %c0_i32_1 = arith.constant 0 : i32
    return %c0_i32, %c0_i32_0 : i32, i32
  }
  func.func @transform_5(%arg0: i32) -> (i32, i32) {
    %c0_i32 = arith.constant 0 : i32
    %c0_i32_0 = arith.constant 0 : i32
    %c0_i32_1 = arith.constant 0 : i32
    return %c0_i32, %c0_i32_0 : i32, i32
  }
  func.func @transform_6(%arg0: i32) -> (i32, i32) {
    %c0_i32 = arith.constant 0 : i32
    %c0_i32_0 = arith.constant 0 : i32
    %c0_i32_1 = arith.constant 0 : i32
    return %c0_i32, %c0_i32_0 : i32, i32
  }
  func.func @transform_7(%arg0: i32) -> (i32, i32) {
    %c0_i32 = arith.constant 0 : i32
    %c0_i32_0 = arith.constant 0 : i32
    return %arg0, %c0_i32 : i32, i32
  }
}

</mosaic_0001>

<llo_original>
// kernel: tpu_custom_call.1
$region0: #{tpu_custom_call.1}
  #allocation0 [shape = 'u32[]', space=smem, size = 0x4, offset = 0x4, fixed_abs, tag = 'smem constant byte address 0x4 - core index']
  #allocation1 [shape = 'u32[144,128]{1,0:T(1,128)}', space=vmem, size = 0x12000, scoped, tag = 'internal scratch']
  %s0 = inlined_call_operand.hbm [shape: f32[8,128], index: 0, kind: input, shape index: {}]
  %s1 = inlined_call_operand.hbm [shape: f32[128,128], index: 1, kind: input, shape index: {}]
  %s2 = inlined_call_operand.vmem [shape: f32[4,128], index: 2, kind: input, shape index: {}]
  %s3 = inlined_call_operand.hbm [shape: f32[128,128], index: 3, kind: input, shape index: {}]
  %s4 = inlined_call_operand.vmem [shape: f32[4,128], index: 4, kind: input, shape index: {}]
  %s5 = inlined_call_operand.hbm [shape: f32[128,128], index: 5, kind: input, shape index: {}]
  %s6 = inlined_call_operand.vmem [shape: f32[1,128], index: 6, kind: input, shape index: {}]
  %s7 = inlined_call_operand.hbm [shape: f32[8,128], index: 7, kind: output, shape index: {}]
  %s8 = sld [smem:[#allocation0]]
  $region54: #{tpu_custom_call.1} parent=0
    _
  %s10 = ssub.s32 1, %s8
  %s11 = scalar_select 0, %s10, %s8
  $region1: #{tpu_custom_call.1} parent=0
    #allocation2 [shape = 'u8[4096]{0}', space=vmem, size = 0x1000, scoped, tag = 'input window, operand 0, single buffered']
    #allocation3 [shape = 's32[1]{0}', space=sflag, size = 0x4, scoped, tag = 'scoped memory for tpu_custom_call.1']
    #allocation4 [shape = 's32[1]{0}', space=sflag, size = 0x4, scoped, tag = 'scoped memory for tpu_custom_call.1']
    #allocation5 [shape = 'u8[65536]{0}', space=vmem, size = 0x10000, scoped, tag = 'input window, operand 1, single buffered']
    #allocation6 [shape = 's32[1]{0}', space=sflag, size = 0x4, scoped, tag = 'scoped memory for tpu_custom_call.1']
    #allocation7 [shape = 'u8[65536]{0}', space=vmem, size = 0x10000, scoped, tag = 'input window, operand 3, single buffered']
    #allocation8 [shape = 'u8[65536]{0}', space=vmem, size = 0x10000, scoped, tag = 'input window, operand 5, single buffered']
    #allocation9 [shape = 's32[1]{0}', space=sflag, size = 0x4, scoped, tag = 'scoped memory for tpu_custom_call.1']
    #allocation10 [shape = 'u8[4096]{0}', space=vmem, size = 0x1000, scoped, tag = 'output window, operand 0, single buffered']
    %12 = vsyncpa [#allocation3], 0
    %13 = vsyncpa [#allocation6], 0
    %14 = vsyncpa [#allocation9], 0
    %15 = vsyncpa [#allocation4], 0
    // Predicated region
    $region2: #{tpu_custom_call.1} parent=1 // pred_check
      _
    $region3: #{tpu_custom_call.1} parent=1 // pred_check_branch
      %17 = sbr.rel (0) target = $region5
    $region4: #{tpu_custom_call.1} parent=1 // pred_region
      %s19 = ssub.s32 128, 128
      %20 = vsyncadd [#allocation3], %s19
      %s22 = sshll.u32 [#allocation2], 4
      %s23 = int_to_ptr.vmem [resolvable:$true] %s22
      %25 = dma.hbm_to_vmem [thread:$0]  %s0, 128, %s23, [#allocation3]
    $region5: #{tpu_custom_call.1} parent=1 // pred_fallthru
      _
    // Predicated region
    $region6: #{tpu_custom_call.1} parent=1 // pred_check
      _
    $region7: #{tpu_custom_call.1} parent=1 // pred_check_branch
      %27 = sbr.rel (0) target = $region9
    $region8: #{tpu_custom_call.1} parent=1 // pred_region
      %s29 = ssub.s32 2048, 2048
      %30 = vsyncadd [#allocation6], %s29
      %s31 = sshll.u32 [#allocation5], 4
      %s32 = int_to_ptr.vmem [resolvable:$true] %s31
      %37 = dma.hbm_to_vmem [thread:$0]  %s1, 2048, %s32, [#allocation6], 128, 128, 8
    $region9: #{tpu_custom_call.1} parent=1 // pred_fallthru
      _
    // Predicated region
    $region10: #{tpu_custom_call.1} parent=1 // pred_check
      _
    $region11: #{tpu_custom_call.1} parent=1 // pred_check_branch
      %39 = sbr.rel (0) target = $region13
    $region12: #{tpu_custom_call.1} parent=1 // pred_region
      _
    $region13: #{tpu_custom_call.1} parent=1 // pred_fallthru
      _
    // Predicated region
    $region14: #{tpu_custom_call.1} parent=1 // pred_check
      _
    $region15: #{tpu_custom_call.1} parent=1 // pred_check_branch
      %41 = sbr.rel (0) target = $region17
    $region16: #{tpu_custom_call.1} parent=1 // pred_region
      %s43 = ssub.s32 2048, 2048
      %44 = vsyncadd [#allocation6], %s43
      %s45 = sshll.u32 [#allocation7], 4
      %s46 = int_to_ptr.vmem [resolvable:$true] %s45
      %51 = dma.hbm_to_vmem [thread:$0]  %s3, 2048, %s46, [#allocation6], 128, 128, 8
    $region17: #{tpu_custom_call.1} parent=1 // pred_fallthru
      _
    // Predicated region
    $region18: #{tpu_custom_call.1} parent=1 // pred_check
      _
    $region19: #{tpu_custom_call.1} parent=1 // pred_check_branch
      %53 = sbr.rel (0) target = $region21
    $region20: #{tpu_custom_call.1} parent=1 // pred_region
      _
    $region21: #{tpu_custom_call.1} parent=1 // pred_fallthru
      _
    // Predicated region
    $region22: #{tpu_custom_call.1} parent=1 // pred_check
      _
    $region23: #{tpu_custom_call.1} parent=1 // pred_check_branch
      %55 = sbr.rel (0) target = $region25
    $region24: #{tpu_custom_call.1} parent=1 // pred_region
      %s57 = ssub.s32 2048, 2048
      %58 = vsyncadd [#allocation9], %s57
      %s59 = sshll.u32 [#allocation8], 4
      %s60 = int_to_ptr.vmem [resolvable:$true] %s59
      %65 = dma.hbm_to_vmem [thread:$0]  %s5, 2048, %s60, [#allocation9], 128, 128, 8
    $region25: #{tpu_custom_call.1} parent=1 // pred_fallthru
      _
    // Predicated region
    $region26: #{tpu_custom_call.1} parent=1 // pred_check
      _
    $region27: #{tpu_custom_call.1} parent=1 // pred_check_branch
      %67 = sbr.rel (0) target = $region29
    $region28: #{tpu_custom_call.1} parent=1 // pred_region
      _
    $region29: #{tpu_custom_call.1} parent=1 // pred_fallthru
      _
    // Predicated region
    $region30: #{tpu_custom_call.1} parent=1 // pred_check
      _
    $region31: #{tpu_custom_call.1} parent=1 // pred_check_branch
      %69 = sbr.rel (0) target = $region33
    $region32: #{tpu_custom_call.1} parent=1 // pred_region
      %70 = dma.done [#allocation3], 128
    $region33: #{tpu_custom_call.1} parent=1 // pred_fallthru
      _
    // Predicated region
    $region34: #{tpu_custom_call.1} parent=1 // pred_check
      _
    $region35: #{tpu_custom_call.1} parent=1 // pred_check_branch
      %72 = sbr.rel (0) target = $region37
    $region36: #{tpu_custom_call.1} parent=1 // pred_region
      %73 = dma.done [#allocation6], 2048
    $region37: #{tpu_custom_call.1} parent=1 // pred_fallthru
      _
    // Predicated region
    $region38: #{tpu_custom_call.1} parent=1 // pred_check
      _
    $region39: #{tpu_custom_call.1} parent=1 // pred_check_branch
      %75 = sbr.rel (0) target = $region41
    $region40: #{tpu_custom_call.1} parent=1 // pred_region
      %76 = dma.done [#allocation6], 2048
    $region41: #{tpu_custom_call.1} parent=1 // pred_fallthru
      _
    // Predicated region
    $region42: #{tpu_custom_call.1} parent=1 // pred_check
      _
    $region43: #{tpu_custom_call.1} parent=1 // pred_check_branch
      %78 = sbr.rel (0) target = $region45
    $region44: #{tpu_custom_call.1} parent=1 // pred_region
      %79 = dma.done [#allocation9], 2048
    $region45: #{tpu_custom_call.1} parent=1 // pred_fallthru
      _
    %v80 = vld [vmem:[#allocation5] sm:$0xff]
    %v81 = vld [vmem:[#allocation5 + $0x8] sm:$0xff]
    %v82 = vld [vmem:[#allocation5 + $0x10] sm:$0xff]
    %v83 = vld [vmem:[#allocation5 + $0x18] sm:$0xff]
    %v84 = vld [vmem:[#allocation5 + $0x20] sm:$0xff]
    %v85 = vld [vmem:[#allocation5 + $0x28] sm:$0xff]
    %v86 = vld [vmem:[#allocation5 + $0x30] sm:$0xff]
    %v87 = vld [vmem:[#allocation5 + $0x38] sm:$0xff]
    %v88 = vld [vmem:[#allocation5 + $0x40] sm:$0xff]
    %v89 = vld [vmem:[#allocation5 + $0x48] sm:$0xff]
    %v90 = vld [vmem:[#allocation5 + $0x50] sm:$0xff]
    %v91 = vld [vmem:[#allocation5 + $0x58] sm:$0xff]
    %v92 = vld [vmem:[#allocation5 + $0x60] sm:$0xff]
    %v93 = vld [vmem:[#allocation5 + $0x68] sm:$0xff]
    %v94 = vld [vmem:[#allocation5 + $0x70] sm:$0xff]
    %v95 = vld [vmem:[#allocation5 + $0x78] sm:$0xff]
    %v96 = vld [vmem:[%s2] sm:$0xf]
    %v97 = vld [vmem:[#allocation7] sm:$0xff]
    %v98 = vld [vmem:[#allocation7 + $0x8] sm:$0xff]
    %v99 = vld [vmem:[#allocation7 + $0x10] sm:$0xff]
    %v100 = vld [vmem:[#allocation7 + $0x18] sm:$0xff]
    %v101 = vld [vmem:[#allocation7 + $0x20] sm:$0xff]
    %v102 = vld [vmem:[#allocation7 + $0x28] sm:$0xff]
    %v103 = vld [vmem:[#allocation7 + $0x30] sm:$0xff]
    %v104 = vld [vmem:[#allocation7 + $0x38] sm:$0xff]
    %v105 = vld [vmem:[#allocation7 + $0x40] sm:$0xff]
    %v106 = vld [vmem:[#allocation7 + $0x48] sm:$0xff]
    %v107 = vld [vmem:[#allocation7 + $0x50] sm:$0xff]
    %v108 = vld [vmem:[#allocation7 + $0x58] sm:$0xff]
    %v109 = vld [vmem:[#allocation7 + $0x60] sm:$0xff]
    %v110 = vld [vmem:[#allocation7 + $0x68] sm:$0xff]
    %v111 = vld [vmem:[#allocation7 + $0x70] sm:$0xff]
    %v112 = vld [vmem:[#allocation7 + $0x78] sm:$0xff]
    %v113 = vld [vmem:[%s4] sm:$0xf]
    %v114 = vld [vmem:[#allocation8] sm:$0xff]
    %v115 = vld [vmem:[#allocation8 + $0x8] sm:$0xff]
    %v116 = vld [vmem:[#allocation8 + $0x10] sm:$0xff]
    %v117 = vld [vmem:[#allocation8 + $0x18] sm:$0xff]
    %v118 = vld [vmem:[#allocation8 + $0x20] sm:$0xff]
    %v119 = vld [vmem:[#allocation8 + $0x28] sm:$0xff]
    %v120 = vld [vmem:[#allocation8 + $0x30] sm:$0xff]
    %v121 = vld [vmem:[#allocation8 + $0x38] sm:$0xff]
    %v122 = vld [vmem:[#allocation8 + $0x40] sm:$0xff]
    %v123 = vld [vmem:[#allocation8 + $0x48] sm:$0xff]
    %v124 = vld [vmem:[#allocation8 + $0x50] sm:$0xff]
    %v125 = vld [vmem:[#allocation8 + $0x58] sm:$0xff]
    %v126 = vld [vmem:[#allocation8 + $0x60] sm:$0xff]
    %v127 = vld [vmem:[#allocation8 + $0x68] sm:$0xff]
    %v128 = vld [vmem:[#allocation8 + $0x70] sm:$0xff]
    %v129 = vld [vmem:[#allocation8 + $0x78] sm:$0xff]
    %v130 = vld [vmem:[%s6] sm:$0x1]
    %v131 = vld [vmem:[#allocation2] sm:$0xff]
    %v132 = vlaneseq
    %v133 = vshrl.u32 %v132, 7
    %v134 = vsub.s32 0, %v133
    %v135 = vrot.slane %v96, %v134
    %136 = vmatprep.subr.mxu0 0.0
    %137 = vmatpush1.msra.mxu0 %v80
    %138 = vmatprep.subr.mxu0 0.0
    %139 = vmatpush1.msra.mxu0 %v81
    %140 = vmatprep.subr.mxu0 0.0
    %141 = vmatpush1.msra.mxu0 %v82
    %142 = vmatprep.subr.mxu0 0.0
    %143 = vmatpush1.msra.mxu0 %v83
    %144 = vmatprep.subr.mxu0 0.0
    %145 = vmatpush1.msra.mxu0 %v84
    %146 = vmatprep.subr.mxu0 0.0
    %147 = vmatpush1.msra.mxu0 %v85
    %148 = vmatprep.subr.mxu0 0.0
    %149 = vmatpush1.msra.mxu0 %v86
    %150 = vmatprep.subr.mxu0 0.0
    %151 = vmatpush1.msra.mxu0 %v87
    %152 = vmatprep.subr.mxu0 0.0
    %153 = vmatpush1.msra.mxu0 %v88
    %154 = vmatprep.subr.mxu0 0.0
    %155 = vmatpush1.msra.mxu0 %v89
    %156 = vmatprep.subr.mxu0 0.0
    %157 = vmatpush1.msra.mxu0 %v90
    %158 = vmatprep.subr.mxu0 0.0
    %159 = vmatpush1.msra.mxu0 %v91
    %160 = vmatprep.subr.mxu0 0.0
    %161 = vmatpush1.msra.mxu0 %v92
    %162 = vmatprep.subr.mxu0 0.0
    %163 = vmatpush1.msra.mxu0 %v93
    %164 = vmatprep.subr.mxu0 0.0
    %165 = vmatpush1.msra.mxu0 %v94
    %166 = vmatprep.subr.mxu0 0.0
    %167 = vmatpush1.msra.mxu0 %v95
    %168 = vmatprep.subr.mxu0 0.0
    %169 = vmatpush1.msra.mxu0 0.0
    %170 = vmatprep.subr.mxu0 0.0
    %171 = vmatpush1.msra.mxu0 0.0
    %172 = vmatprep.subr.mxu0 0.0
    %173 = vmatpush1.msra.mxu0 0.0
    %174 = vmatprep.subr.mxu0 0.0
    %175 = vmatpush1.msra.mxu0 0.0
    %176 = vmatprep.subr.mxu0 0.0
    %177 = vmatpush1.msra.mxu0 0.0
    %178 = vmatprep.subr.mxu0 0.0
    %179 = vmatpush1.msra.mxu0 0.0
    %180 = vmatprep.subr.mxu0 0.0
    %181 = vmatpush1.msra.mxu0 0.0
    %182 = vmatprep.subr.mxu0 0.0
    %183 = vmatpush1.msra.mxu0 0.0
    %184 = vmatprep.subr.mxu0 0.0
    %185 = vmatpush1.msra.mxu0 0.0
    %186 = vmatprep.subr.mxu0 0.0
    %187 = vmatpush1.msra.mxu0 0.0
    %188 = vmatprep.subr.mxu0 0.0
    %189 = vmatpush1.msra.mxu0 0.0
    %190 = vmatprep.subr.mxu0 0.0
    %191 = vmatpush1.msra.mxu0 0.0
    %192 = vmatprep.subr.mxu0 0.0
    %193 = vmatpush1.msra.mxu0 0.0
    %194 = vmatprep.subr.mxu0 0.0
    %195 = vmatpush1.msra.mxu0 0.0
    %196 = vmatprep.subr.mxu0 0.0
    %197 = vmatpush1.msra.mxu0 0.0
    %198 = vmatprep.subr.mxu0 0.0
    %199 = vmatpush1.msra.mxu0 0.0
    %200 = vmatprep.mubr.f32.mxu0 0.0
    %201 = vmatmul.mubr.f32.gmra.mrb[0].mxu0 %v131
    %v202 = vpop.f32.mrb[0].mxu0
    %v203 = vadd.f32 %v135, %v202
    %v204 = vpop.f32.mrb[0].mxu0
    %205 = vdwg.mxu0
    %206 = vadd.xlane.f32.xlu0 %v203
    %v207 = vpop.xlane.xlu0 %206
    %v208 = vmul.f32 %v207, 0.015625
    %v209 = vsub.f32 %v203, %v208
    %v210 = vlaneseq
    %v211 = vshrl.u32 %v210, 7
    %v212 = vsub.s32 3, %v211
    %v213 = vrot.slane %v96, %v212
    %v214 = vmul.f32 %v209, %v213
    %v215 = vmul.f32 %v214, %v214
    %216 = vadd.xlane.f32.xlu0 %v215
    %v217 = vpop.xlane.xlu0 %216
    %v218 = vmul.f32 %v217, 0.015625
    %v219 = vadd.f32 %v218, 1e-05
    %v220 = vrsqrt.pop %v219
    %v221 = vmul.f32 %v214, %v220
    %v222 = vlaneseq
    %v223 = vshrl.u32 %v222, 7
    %v224 = vsub.s32 1, %v223
    %v225 = vrot.slane %v96, %v224
    %v226 = vmul.f32 %v221, %v225
    %v227 = vlaneseq
    %v228 = vshrl.u32 %v227, 7
    %v229 = vsub.s32 2, %v228
    %v230 = vrot.slane %v96, %v229
    %v231 = vadd.f32 %v226, %v230
    %v232 = vmax.f32 %v231, 0.0
    %v233 = vlaneseq
    %v234 = vshrl.u32 %v233, 7
    %v235 = vsub.s32 0, %v234
    %v236 = vrot.slane %v113, %v235
    %237 = vmatprep.subr.mxu0 0.0
    %238 = vmatpush1.msra.mxu0 %v97
    %239 = vmatprep.subr.mxu0 0.0
    %240 = vmatpush1.msra.mxu0 %v98
    %241 = vmatprep.subr.mxu0 0.0
    %242 = vmatpush1.msra.mxu0 %v99
    %243 = vmatprep.subr.mxu0 0.0
    %244 = vmatpush1.msra.mxu0 %v100
    %245 = vmatprep.subr.mxu0 0.0
    %246 = vmatpush1.msra.mxu0 %v101
    %247 = vmatprep.subr.mxu0 0.0
    %248 = vmatpush1.msra.mxu0 %v102
    %249 = vmatprep.subr.mxu0 0.0
    %250 = vmatpush1.msra.mxu0 %v103
    %251 = vmatprep.subr.mxu0 0.0
    %252 = vmatpush1.msra.mxu0 %v104
    %253 = vmatprep.subr.mxu0 0.0
    %254 = vmatpush1.msra.mxu0 %v105
    %255 = vmatprep.subr.mxu0 0.0
    %256 = vmatpush1.msra.mxu0 %v106
    %257 = vmatprep.subr.mxu0 0.0
    %258 = vmatpush1.msra.mxu0 %v107
    %259 = vmatprep.subr.mxu0 0.0
    %260 = vmatpush1.msra.mxu0 %v108
    %261 = vmatprep.subr.mxu0 0.0
    %262 = vmatpush1.msra.mxu0 %v109
    %263 = vmatprep.subr.mxu0 0.0
    %264 = vmatpush1.msra.mxu0 %v110
    %265 = vmatprep.subr.mxu0 0.0
    %266 = vmatpush1.msra.mxu0 %v111
    %267 = vmatprep.subr.mxu0 0.0
    %268 = vmatpush1.msra.mxu0 %v112
    %269 = vmatprep.subr.mxu0 0.0
    %270 = vmatpush1.msra.mxu0 0.0
    %271 = vmatprep.subr.mxu0 0.0
    %272 = vmatpush1.msra.mxu0 0.0
    %273 = vmatprep.subr.mxu0 0.0
    %274 = vmatpush1.msra.mxu0 0.0
    %275 = vmatprep.subr.mxu0 0.0
    %276 = vmatpush1.msra.mxu0 0.0
    %277 = vmatprep.subr.mxu0 0.0
    %278 = vmatpush1.msra.mxu0 0.0
    %279 = vmatprep.subr.mxu0 0.0
    %280 = vmatpush1.msra.mxu0 0.0
    %281 = vmatprep.subr.mxu0 0.0
    %282 = vmatpush1.msra.mxu0 0.0
    %283 = vmatprep.subr.mxu0 0.0
    %284 = vmatpush1.msra.mxu0 0.0
    %285 = vmatprep.subr.mxu0 0.0
    %286 = vmatpush1.msra.mxu0 0.0
    %287 = vmatprep.subr.mxu0 0.0
    %288 = vmatpush1.msra.mxu0 0.0
    %289 = vmatprep.subr.mxu0 0.0
    %290 = vmatpush1.msra.mxu0 0.0
    %291 = vmatprep.subr.mxu0 0.0
    %292 = vmatpush1.msra.mxu0 0.0
    %293 = vmatprep.subr.mxu0 0.0
    %294 = vmatpush1.msra.mxu0 0.0
    %295 = vmatprep.subr.mxu0 0.0
    %296 = vmatpush1.msra.mxu0 0.0
    %297 = vmatprep.subr.mxu0 0.0
    %298 = vmatpush1.msra.mxu0 0.0
    %299 = vmatprep.subr.mxu0 0.0
    %300 = vmatpush1.msra.mxu0 0.0
    %301 = vmatprep.mubr.f32.mxu0 0.0
    %302 = vmatmul.mubr.f32.gmra.mrb[0].mxu0 %v232
    %v303 = vpop.f32.mrb[0].mxu0
    %v304 = vadd.f32 %v236, %v303
    %v305 = vpop.f32.mrb[0].mxu0
    %306 = vdwg.mxu0
    %307 = vadd.xlane.f32.xlu0 %v304
    %v308 = vpop.xlane.xlu0 %307
    %v309 = vmul.f32 %v308, 0.03125
    %v310 = vsub.f32 %v304, %v309
    %v311 = vlaneseq
    %v312 = vshrl.u32 %v311, 7
    %v313 = vsub.s32 3, %v312
    %v314 = vrot.slane %v113, %v313
    %v315 = vmul.f32 %v310, %v314
    %v316 = vmul.f32 %v315, %v315
    %317 = vadd.xlane.f32.xlu0 %v316
    %v318 = vpop.xlane.xlu0 %317
    %v319 = vmul.f32 %v318, 0.03125
    %v320 = vadd.f32 %v319, 1e-05
    %v321 = vrsqrt.pop %v320
    %v322 = vmul.f32 %v315, %v321
    %v323 = vlaneseq
    %v324 = vshrl.u32 %v323, 7
    %v325 = vsub.s32 1, %v324
    %v326 = vrot.slane %v113, %v325
    %v327 = vmul.f32 %v322, %v326
    %v328 = vlaneseq
    %v329 = vshrl.u32 %v328, 7
    %v330 = vsub.s32 2, %v329
    %v331 = vrot.slane %v113, %v330
    %v332 = vadd.f32 %v327, %v331
    %v333 = vmax.f32 %v332, 0.0
    %v335 = vlaneseq
    %v336 = vshrl.u32 %v335, 7
    %v337 = vsub.s32 0, %v336
    %v338 = vrot.slane %v130, %v337
    %340 = vmatprep.subr.mxu0 0.0
    %341 = vmatpush1.msra.mxu0 %v114
    %342 = vmatprep.subr.mxu0 0.0
    %343 = vmatpush1.msra.mxu0 %v115
    %344 = vmatprep.subr.mxu0 0.0
    %345 = vmatpush1.msra.mxu0 %v116
    %346 = vmatprep.subr.mxu0 0.0
    %347 = vmatpush1.msra.mxu0 %v117
    %348 = vmatprep.subr.mxu0 0.0
    %349 = vmatpush1.msra.mxu0 %v118
    %350 = vmatprep.subr.mxu0 0.0
    %351 = vmatpush1.msra.mxu0 %v119
    %352 = vmatprep.subr.mxu0 0.0
    %353 = vmatpush1.msra.mxu0 %v120
    %354 = vmatprep.subr.mxu0 0.0
    %355 = vmatpush1.msra.mxu0 %v121
    %356 = vmatprep.subr.mxu0 0.0
    %357 = vmatpush1.msra.mxu0 %v122
    %358 = vmatprep.subr.mxu0 0.0
    %359 = vmatpush1.msra.mxu0 %v123
    %360 = vmatprep.subr.mxu0 0.0
    %361 = vmatpush1.msra.mxu0 %v124
    %362 = vmatprep.subr.mxu0 0.0
    %363 = vmatpush1.msra.mxu0 %v125
    %364 = vmatprep.subr.mxu0 0.0
    %365 = vmatpush1.msra.mxu0 %v126
    %366 = vmatprep.subr.mxu0 0.0
    %367 = vmatpush1.msra.mxu0 %v127
    %368 = vmatprep.subr.mxu0 0.0
    %369 = vmatpush1.msra.mxu0 %v128
    %370 = vmatprep.subr.mxu0 0.0
    %371 = vmatpush1.msra.mxu0 %v129
    %372 = vmatprep.subr.mxu0 0.0
    %373 = vmatpush1.msra.mxu0 0.0
    %374 = vmatprep.subr.mxu0 0.0
    %375 = vmatpush1.msra.mxu0 0.0
    %376 = vmatprep.subr.mxu0 0.0
    %377 = vmatpush1.msra.mxu0 0.0
    %378 = vmatprep.subr.mxu0 0.0
    %379 = vmatpush1.msra.mxu0 0.0
    %380 = vmatprep.subr.mxu0 0.0
    %381 = vmatpush1.msra.mxu0 0.0
    %382 = vmatprep.subr.mxu0 0.0
    %383 = vmatpush1.msra.mxu0 0.0
    %384 = vmatprep.subr.mxu0 0.0
    %385 = vmatpush1.msra.mxu0 0.0
    %386 = vmatprep.subr.mxu0 0.0
    %387 = vmatpush1.msra.mxu0 0.0
    %388 = vmatprep.subr.mxu0 0.0
    %389 = vmatpush1.msra.mxu0 0.0
    %390 = vmatprep.subr.mxu0 0.0
    %391 = vmatpush1.msra.mxu0 0.0
    %392 = vmatprep.subr.mxu0 0.0
    %393 = vmatpush1.msra.mxu0 0.0
    %394 = vmatprep.subr.mxu0 0.0
    %395 = vmatpush1.msra.mxu0 0.0
    %396 = vmatprep.subr.mxu0 0.0
    %397 = vmatpush1.msra.mxu0 0.0
    %398 = vmatprep.subr.mxu0 0.0
    %399 = vmatpush1.msra.mxu0 0.0
    %400 = vmatprep.subr.mxu0 0.0
    %401 = vmatpush1.msra.mxu0 0.0
    %402 = vmatprep.subr.mxu0 0.0
    %403 = vmatpush1.msra.mxu0 0.0
    %404 = vmatprep.mubr.f32.mxu0 0.0
    %405 = vmatmul.mubr.f32.gmra.mrb[0].mxu0 %v333
    %v406 = vpop.f32.mrb[0].mxu0
    %v407 = vadd.f32 %v338, %v406
    %v408 = vpop.f32.mrb[0].mxu0
    %409 = vdwg.mxu0
    %410 = vst [vmem:[#allocation10] sm:$0xff] %v407
    // Predicated region
    $region46: #{tpu_custom_call.1} parent=1 // pred_check
      _
    $region47: #{tpu_custom_call.1} parent=1 // pred_check_branch
      %412 = sbr.rel (0) target = $region49
    $region48: #{tpu_custom_call.1} parent=1 // pred_region
      %s414 = ssub.s32 128, 128
      %415 = vsyncadd [#allocation4], %s414
      %s417 = sshll.u32 [#allocation10], 4
      %s418 = int_to_ptr.vmem [resolvable:$true] %s417
      %420 = dma.vmem_to_hbm [thread:$0]  %s418, 128, %s7, [#allocation4]
    $region49: #{tpu_custom_call.1} parent=1 // pred_fallthru
      _
    // Predicated region
    $region50: #{tpu_custom_call.1} parent=1 // pred_check
      _
    $region51: #{tpu_custom_call.1} parent=1 // pred_check_branch
      %422 = sbr.rel (0) target = $region53
    $region52: #{tpu_custom_call.1} parent=1 // pred_region
      %423 = dma.done [#allocation4], 128
    $region53: #{tpu_custom_call.1} parent=1 // pred_fallthru
      _
    %424 = vsyncpa [#allocation3], 1
    %425 = vsyncpa [#allocation6], 1
    %426 = vsyncpa [#allocation9], 1
    %427 = vsyncpa [#allocation4], 1

</llo_original>
